<compile_context>
chip_gen: v5e
topology: v5e:2x2
jax: 0.10.0
libtpu: 0.0.40
codegen_flags: <defaults>
</compile_context>

<pallas_src>
import functools

import jax
import jax.numpy as jnp
from jax.experimental import pallas as pl
from jax.experimental.pallas import tpu as pltpu

_LANE = 128
_MIB = 1024 * 1024


def _round_up(n, m):
    return (n + m - 1) // m * m


def _vmem_limit_bytes():
    """Scoped-VMEM budget: physical - 16 MiB, capped at 112 MiB, floor 32 MiB."""
    cap = None
    try:
        info = pltpu.get_tpu_info()
        for name in ("vmem_capacity_bytes", "vmem_bytes", "vmem_size_bytes"):
            v = getattr(info, name, None)
            if v:
                cap = int(v)
                break
    except Exception:
        cap = None
    if cap is None:
        kind = ""
        try:
            kind = jax.devices()[0].device_kind.lower()
        except Exception:
            pass
        # v5e / v6e carry 128 MiB per core; assume the smaller 64 MiB otherwise.
        cap = 128 * _MIB if ("v5" in kind or "v6" in kind) else 64 * _MIB
    return max(32 * _MIB, min(cap - 16 * _MIB, 112 * _MIB))


def _bspec(block_shape, index_map, buffer_count=None):
    if buffer_count is None:
        return pl.BlockSpec(block_shape, index_map)
    return pl.BlockSpec(block_shape, index_map,
                        pipeline_mode=pl.Buffered(buffer_count))


# ----------------------------- fused single-pass -----------------------------

def _ca_fused_kernel(x_ref, w1t_ref, w2_ref, o_ref):
    # x_ref: (C, HW); w1t_ref: (C, hidden); w2_ref: (C, hidden)
    x = x_ref[...]
    pooled = jnp.max(x, axis=1, keepdims=True).astype(jnp.float32)        # (C, 1)
    w1t = w1t_ref[...].astype(jnp.float32)
    w2 = w2_ref[...].astype(jnp.float32)
    # fc1 + ReLU: h[j] = relu(sum_c w1[j, c] * pooled[c])  -> (1, hidden)  (VPU + sublane reduce)
    h = jnp.maximum(jnp.sum(w1t * pooled, axis=0, keepdims=True), 0.0)
    # fc2 + sigmoid: a[c] = sigmoid(sum_j w2[c, j] * h[j]) -> (C, 1)       (VPU + lane reduce)
    a = jax.nn.sigmoid(jnp.sum(w2 * h, axis=1, keepdims=True))
    o_ref[...] = (a.astype(x.dtype) * x).astype(o_ref.dtype)


# ------------------------------ 2-pass fallback -------------------------------

def _pool_fc_kernel(x_ref, w1t_ref, w2_ref, a_ref, p_sc, *, hw, hw_tile):
    # x_ref: (C, hw_tile); a_ref: (C, 1) attention output (x dtype);
    # p_sc:  (C, 1) f32 running-max accumulator across the HW-tile axis.
    t = pl.program_id(1)

    @pl.when(t == 0)
    def _():
        p_sc[...] = jnp.full(p_sc.shape, -jnp.inf, dtype=p_sc.dtype)

    x = x_ref[...].astype(jnp.float32)
    # Mask out-of-range columns of the (possibly partial) last tile: OOB lanes
    # of a partial block are not guaranteed to be -inf.
    valid = hw - t * hw_tile
    col = jax.lax.broadcasted_iota(jnp.int32, x.shape, 1)
    x = jnp.where(col < valid, x, -jnp.inf)
    p_sc[...] = jnp.maximum(p_sc[...], jnp.max(x, axis=1, keepdims=True))

    @pl.when(t == pl.num_programs(1) - 1)
    def _():
        pooled = p_sc[...]
        w1t = w1t_ref[...].astype(jnp.float32)
        w2 = w2_ref[...].astype(jnp.float32)
        h = jnp.maximum(jnp.sum(w1t * pooled, axis=0, keepdims=True), 0.0)
        a = jax.nn.sigmoid(jnp.sum(w2 * h, axis=1, keepdims=True))
        a_ref[...] = a.astype(a_ref.dtype)


def _scale_kernel(x_ref, a_ref, o_ref):
    # x_ref: (C, hw_tile); a_ref: (C, 1) -> broadcast multiply over lanes.
    # OOB columns of a partial last tile are clipped on store; no mask needed.
    o_ref[...] = (a_ref[...] * x_ref[...]).astype(o_ref.dtype)


def _choose_hw_tile(hw, budget_bytes, bytes_per_col):
    """Largest lane-multiple HW tile fitting the budget, balanced across tiles."""
    max_cols = max(_LANE, budget_bytes // max(bytes_per_col, 1))
    max_tile = max(_LANE, (max_cols // _LANE) * _LANE)
    n = pl.cdiv(hw, max_tile)
    if n <= 1:
        return hw, 1                      # single full-dim tile ((8,128)-exempt)
    tile = _round_up(pl.cdiv(hw, n), _LANE)
    return tile, pl.cdiv(hw, tile)


# ---------------------------------- wrapper -----------------------------------

def channel_attention(x, w1, w2, *, force_two_pass=False, _force_hw_tile=None):
    """ChannelAttention forward.

    x:  (B, C, H, W)
    w1: (hidden, C)  fc1 weight (Conv2d(C, hidden, 1, bias=False), squeezed)
    w2: (C, hidden)  fc2 weight (Conv2d(hidden, C, 1, bias=False), squeezed)
    """
    B, C, H, W = x.shape
    hidden = w1.shape[0]
    HW = H * W
    itemsize = jnp.dtype(x.dtype).itemsize
    w_itemsize = jnp.dtype(w1.dtype).itemsize
    vmem_limit = _vmem_limit_bytes()

    x2 = x.reshape(B, C, HW)
    w1t = w1.T                                        # (C, hidden)

    slab = C * HW * itemsize                          # one (C, HW) VMEM buffer
    weights = 2 * C * hidden * w_itemsize
    budget = max(vmem_limit - weights - 2 * _MIB, 8 * _MIB)

    # Buffering plan for the fused path: prefer full double-buffering of
    # input + output (4 slabs); otherwise drop the output, then both, to
    # single-buffering before falling back to the 2-pass plan.
    in_buf = out_buf = None
    use_fused = not force_two_pass
    if use_fused:
        if 4 * slab <= budget:
            pass                                      # default: double-buffered
        elif 3 * slab <= budget:
            out_buf = 1                               # single-buffer the output
        elif 2 * slab <= budget:
            in_buf = out_buf = 1                      # single-buffer both
        else:
            use_fused = False

    if use_fused:
        # TODO(synk): at B < num TensorCores (v7x), a second parallel axis
        # could let both cores issue DMAs; gate on a measured single-TC HBM
        # ceiling before adding that plan.
        cost = pl.CostEstimate(
            flops=int(2 * B * C * HW + 4 * B * C * hidden),
            transcendentals=int(B * C),
            bytes_accessed=int(2 * B * C * HW * itemsize + weights),
        )
        out = pl.pallas_call(
            _ca_fused_kernel,
            out_shape=jax.ShapeDtypeStruct((B, C, HW), x.dtype),
            grid=(B,),
            in_specs=[
                _bspec((pl.Squeezed(), C, HW), lambda b: (b, 0, 0), in_buf),
                pl.BlockSpec((C, hidden), lambda b: (0, 0)),   # resident weights
                pl.BlockSpec((C, hidden), lambda b: (0, 0)),
            ],
            out_specs=_bspec((pl.Squeezed(), C, HW), lambda b: (b, 0, 0), out_buf),
            compiler_params=pltpu.CompilerParams(
                dimension_semantics=("parallel",),
                vmem_limit_bytes=vmem_limit),
            cost_estimate=cost,
        )(x2, w1t, w2)
        return out.reshape(B, C, H, W)

    # ---- 2-pass fallback: per-batch slab too large for the VMEM budget ----
    if _force_hw_tile is not None:
        pool_tile = scale_tile = int(_force_hw_tile)
        pool_nt = scale_nt = pl.cdiv(HW, pool_tile)
    else:
        # Pool pass streams only the input (2 bufs) + a (C,1) accumulator, so
        # its tile can be ~2x the scale pass's (in + out, 4 bufs).
        pool_tile, pool_nt = _choose_hw_tile(HW, int(0.75 * budget), 2 * C * itemsize)
        scale_tile, scale_nt = _choose_hw_tile(HW, int(0.75 * budget), 4 * C * itemsize)

    # Pass 1: tiled max pool + in-kernel tiny FCs + sigmoid -> attn (B, C, 1).
    pool_cost = pl.CostEstimate(
        flops=int(B * C * HW + 4 * B * C * hidden),
        transcendentals=int(B * C),
        bytes_accessed=int(B * C * HW * itemsize + B * C * itemsize + weights),
    )
    attn = pl.pallas_call(
        functools.partial(_pool_fc_kernel, hw=HW, hw_tile=pool_tile),
        out_shape=jax.ShapeDtypeStruct((B, C, 1), x.dtype),
        grid=(B, pool_nt),
        in_specs=[
            pl.BlockSpec((pl.Squeezed(), C, pool_tile), lambda b, t: (b, 0, t)),
            pl.BlockSpec((C, hidden), lambda b, t: (0, 0)),
            pl.BlockSpec((C, hidden), lambda b, t: (0, 0)),
        ],
        out_specs=pl.BlockSpec((pl.Squeezed(), C, 1), lambda b, t: (b, 0, 0)),
        scratch_shapes=[pltpu.VMEM((C, 1), jnp.float32)],
        compiler_params=pltpu.CompilerParams(
            dimension_semantics=("parallel", "arbitrary"),
            vmem_limit_bytes=vmem_limit),
        cost_estimate=pool_cost,
    )(x2, w1t, w2)

    # Pass 2: fully-parallel tiled broadcast multiply.
    scale_cost = pl.CostEstimate(
        flops=int(B * C * HW),
        transcendentals=0,
        bytes_accessed=int(2 * B * C * HW * itemsize + B * C * itemsize),
    )
    out = pl.pallas_call(
        _scale_kernel,
        out_shape=jax.ShapeDtypeStruct((B, C, HW), x.dtype),
        grid=(B, scale_nt),
        in_specs=[
            pl.BlockSpec((pl.Squeezed(), C, scale_tile), lambda b, t: (b, 0, t)),
            pl.BlockSpec((pl.Squeezed(), C, 1), lambda b, t: (b, 0, 0)),
        ],
        out_specs=pl.BlockSpec((pl.Squeezed(), C, scale_tile), lambda b, t: (b, 0, t)),
        compiler_params=pltpu.CompilerParams(
            dimension_semantics=("parallel", "parallel"),
            vmem_limit_bytes=vmem_limit),
        cost_estimate=scale_cost,
    )(x2, attn)
    return out.reshape(B, C, H, W)


def channel_attention_ref(x, w1, w2):
    """Pure-JAX reference mirroring the PyTorch forward."""
    pooled = jnp.max(x, axis=(2, 3))                    # (B, C)
    h = jnp.maximum(pooled @ w1.T, 0.0)                 # (B, hidden)
    a = jax.nn.sigmoid(h @ w2.T)                        # (B, C)
    return a[:, :, None, None] * x


if __name__ == "__main__":
    # in_planes must be >= 16 (module uses in_planes // 16 for the hidden dim).
    B, C, H, W = 2, 32, 16, 16
    hidden = C // 16

    key = jax.random.PRNGKey(0)
    kx, k1, k2 = jax.random.split(key, 3)
    x = jax.random.normal(kx, (B, C, H, W), dtype=jnp.float32)
    # Conv2d weights (out, in, 1, 1) with bias=False -> squeezed to 2-D.
    w1 = jax.random.normal(k1, (hidden, C), dtype=jnp.float32) * (1.0 / jnp.sqrt(C))
    w2 = jax.random.normal(k2, (C, hidden), dtype=jnp.float32) * (1.0 / jnp.sqrt(hidden))

    ref = channel_attention_ref(x, w1, w2)

    # Primary fused single-pass path (no padding, lane-multiple HW).
    out = jax.block_until_ready(channel_attention(x, w1, w2))
    assert out.shape == (B, C, H, W)
    assert jnp.allclose(out, ref, atol=1e-5, rtol=1e-5), "fused path mismatch"

    # Non-lane-multiple spatial size: fused path with full-dim block, no pad/slice.
    x_odd = jax.random.normal(kx, (B, C, 14, 14), dtype=jnp.float32)
    ref_odd = channel_attention_ref(x_odd, w1, w2)
    out_odd = jax.block_until_ready(channel_attention(x_odd, w1, w2))
    assert jnp.allclose(out_odd, ref_odd, atol=1e-5, rtol=1e-5), "fused odd-HW mismatch"

    # Two-pass fallback (selected automatically for large feature maps / tight
    # VMEM, e.g. v7x); exercised explicitly, including the in-kernel tiny FCs.
    out2 = jax.block_until_ready(channel_attention(x, w1, w2, force_two_pass=True))
    assert jnp.allclose(out2, ref, atol=1e-5, rtol=1e-5), "two-pass mismatch"

    # Fallback with a partial (masked) last HW tile: 196 cols, 128-wide tiles.
    out3 = jax.block_until_ready(
        channel_attention(x_odd, w1, w2, force_two_pass=True, _force_hw_tile=128))
    assert jnp.allclose(out3, ref_odd, atol=1e-5, rtol=1e-5), "masked-tile mismatch"

    print("KERNEL_OK")
</pallas_src>

<mosaic_0001>
module attributes {stable_mosaic.version = 11 : i64} {
  func.func @_ca_fused_kernel(%arg0: i32, %arg1: memref<1x32x256xf32, #tpu.memory_space<vmem>>, %arg2: memref<32x2xf32, #tpu.memory_space<vmem>>, %arg3: memref<32x2xf32, #tpu.memory_space<vmem>>, %arg4: memref<1x32x256xf32, #tpu.memory_space<vmem>>) attributes {dimension_semantics = [#tpu.dimension_semantics<parallel>], iteration_bounds = array<i64: 2>, scalar_prefetch = 0 : i64, scratch_operands = 0 : i64, tpu.core_type = #tpu.core_type<tc>, window_params = [{transform_indices = @transform_0, window_bounds = array<i64: 1, 32, 256>}, {pipeline_mode = #tpu.pipeline_mode<synchronous>, transform_indices = @transform_1, window_bounds = array<i64: 32, 2>}, {pipeline_mode = #tpu.pipeline_mode<synchronous>, transform_indices = @transform_2, window_bounds = array<i64: 32, 2>}, {transform_indices = @transform_3, window_bounds = array<i64: 1, 32, 256>}]} {
    %c0 = arith.constant 0 : index
    %c0_0 = arith.constant 0 : index
    %c0_1 = arith.constant 0 : index
    %0 = vector.load %arg1[%c0, %c0_0, %c0_1] : memref<1x32x256xf32, #tpu.memory_space<vmem>>, vector<1x32x256xf32>
    %1 = vector.shape_cast %0 : vector<1x32x256xf32> to vector<32x256xf32>
    %cst = arith.constant dense<0xFF800000> : vector<32xf32>
    %2 = vector.multi_reduction <maximumf>, %1, %cst [1] : vector<32x256xf32> to vector<32xf32>
    %3 = vector.shape_cast %2 : vector<32xf32> to vector<32x1xf32>
    %c0_2 = arith.constant 0 : index
    %c0_3 = arith.constant 0 : index
    %4 = vector.load %arg2[%c0_2, %c0_3] : memref<32x2xf32, #tpu.memory_space<vmem>>, vector<32x2xf32>
    %c0_4 = arith.constant 0 : index
    %c0_5 = arith.constant 0 : index
    %5 = vector.load %arg3[%c0_4, %c0_5] : memref<32x2xf32, #tpu.memory_space<vmem>>, vector<32x2xf32>
    %6 = vector.broadcast %3 : vector<32x1xf32> to vector<32x2xf32>
    %7 = arith.mulf %4, %6 : vector<32x2xf32>
    %cst_6 = arith.constant dense<0.000000e+00> : vector<2xf32>
    %8 = vector.multi_reduction <add>, %7, %cst_6 [0] : vector<32x2xf32> to vector<2xf32>
    %9 = vector.shape_cast %8 : vector<2xf32> to vector<1x2xf32>
    %cst_7 = arith.constant 0.000000e+00 : f32
    %10 = vector.broadcast %cst_7 : f32 to vector<1x2xf32>
    %11 = arith.maximumf %9, %10 : vector<1x2xf32>
    %12 = vector.broadcast %11 : vector<1x2xf32> to vector<32x2xf32>
    %13 = arith.mulf %5, %12 : vector<32x2xf32>
    %cst_8 = arith.constant dense<0.000000e+00> : vector<32xf32>
    %14 = vector.multi_reduction <add>, %13, %cst_8 [1] : vector<32x2xf32> to vector<32xf32>
    %15 = vector.shape_cast %14 : vector<32xf32> to vector<32x1xf32>
    %16 = arith.negf %15 : vector<32x1xf32>
    %17 = math.exp %16 : vector<32x1xf32>
    %cst_9 = arith.constant 1.000000e+00 : f32
    %18 = vector.broadcast %cst_9 : f32 to vector<32x1xf32>
    %19 = arith.addf %18, %17 : vector<32x1xf32>
    %20 = arith.divf %18, %19 : vector<32x1xf32>
    %21 = vector.broadcast %20 : vector<32x1xf32> to vector<32x256xf32>
    %22 = arith.mulf %21, %1 : vector<32x256xf32>
    %c0_10 = arith.constant 0 : index
    %c0_11 = arith.constant 0 : index
    %c0_12 = arith.constant 0 : index
    %23 = vector.load %arg4[%c0_10, %c0_11, %c0_12] : memref<1x32x256xf32, #tpu.memory_space<vmem>>, vector<1x32x256xf32>
    %24 = vector.shape_cast %23 : vector<1x32x256xf32> to vector<32x256xf32>
    %25 = vector.shape_cast %22 : vector<32x256xf32> to vector<1x32x256xf32>
    tpu.vector_store %arg4[%c0_10, %c0_11, %c0_12], %25 {strides = array<i32>} : memref<1x32x256xf32, #tpu.memory_space<vmem>>, vector<1x32x256xf32>,
    return
  }
  func.func @transform_0(%arg0: i32) -> (i32, i32, i32) {
    %c0_i32 = arith.constant 0 : i32
    %c0_i32_0 = arith.constant 0 : i32
    %c0_i32_1 = arith.constant 0 : i32
    return %arg0, %c0_i32, %c0_i32_0 : i32, i32, i32
  }
  func.func @transform_1(%arg0: i32) -> (i32, i32) {
    %c0_i32 = arith.constant 0 : i32
    %c0_i32_0 = arith.constant 0 : i32
    %c0_i32_1 = arith.constant 0 : i32
    return %c0_i32, %c0_i32_0 : i32, i32
  }
  func.func @transform_2(%arg0: i32) -> (i32, i32) {
    %c0_i32 = arith.constant 0 : i32
    %c0_i32_0 = arith.constant 0 : i32
    %c0_i32_1 = arith.constant 0 : i32
    return %c0_i32, %c0_i32_0 : i32, i32
  }
  func.func @transform_3(%arg0: i32) -> (i32, i32, i32) {
    %c0_i32 = arith.constant 0 : i32
    %c0_i32_0 = arith.constant 0 : i32
    %c0_i32_1 = arith.constant 0 : i32
    return %arg0, %c0_i32, %c0_i32_0 : i32, i32, i32
  }
}

</mosaic_0001>

<llo_original>
// kernel: tpu_custom_call.1
$region0: #{tpu_custom_call.1}
  #allocation0 [shape = 'u32[]', space=smem, size = 0x4, offset = 0x4, fixed_abs, tag = 'smem constant byte address 0x4 - core index']
  #allocation1 [shape = 'u32[72,128]{1,0:T(1,128)}', space=vmem, size = 0x9000, scoped, tag = 'internal scratch']
  %s0 = inlined_call_operand.hbm [shape: f32[2,32,256], index: 0, kind: input, shape index: {}]
  %s1 = inlined_call_operand.vmem [shape: f32[32,2], index: 1, kind: input, shape index: {}]
  %s2 = inlined_call_operand.vmem [shape: f32[32,2], index: 2, kind: input, shape index: {}]
  %s3 = inlined_call_operand.hbm [shape: f32[2,32,256], index: 3, kind: output, shape index: {}]
  %s4 = sld [smem:[#allocation0]]
  $region49: #{tpu_custom_call.1} parent=0
    _
  %s6 = ssub.s32 1, %s4
  %s7 = scalar_select 0, %s6, %s4
  $region1: #{tpu_custom_call.1} parent=0
    #allocation2 [shape = 'u8[65536]{0}', space=vmem, size = 0x10000, scoped, tag = 'input window, operand 0']
    #allocation3 [shape = 's32[2]{0}', space=sflag, size = 0x8, scoped, tag = 'scoped memory for tpu_custom_call.1']
    #allocation4 [shape = 's32[2]{0}', space=sflag, size = 0x8, scoped, tag = 'scoped memory for tpu_custom_call.1']
    #allocation5 [shape = 'u8[65536]{0}', space=vmem, size = 0x10000, scoped, tag = 'output window, operand 0']
    %8 = vsyncpa [#allocation3], 0
    %s9 = scalar_lea.sflag [#allocation3], 1
    %10 = vsyncpa %s9, 0
    %11 = vsyncpa [#allocation4], 0
    %s12 = scalar_lea.sflag [#allocation4], 1
    %13 = vsyncpa %s12, 0
    loop: start=0, step=1, limit=4
    $region2: #{tpu_custom_call.1} parent=1 // loop_pre_header
      _
    $region3: #{tpu_custom_call.1} parent=1 // loop_header
      %s15 = sphi 0, %s19
      %p16 = scmp.ge.s32.totalorder %s15, 4
      %s25 = sphi 0, %s27
      %s28 = sphi 0, %s25
      %s29 = sphi 0, %s28
      %s45 = sphi 0, %s29
      %s49 = sphi 0, %s49
      %s51 = sphi 0, %s49
      %s52 = sphi 0, %s51
      %s66 = sphi 0, %s52
      %s70 = sphi 0, %s70
      %s72 = sphi 0, %s70
      %s73 = sphi 0, %s72
      %s87 = sphi 0, %s73
      %s93 = sphi 0, %s95
      %s96 = sphi 0, %s93
      %s97 = sphi 0, %s96
      %s113 = sphi 0, %s97
    $region4: #{tpu_custom_call.1} parent=1 // loop_header_branch
      %18 = sbr.rel (%p16) target = $region8
    $region5: #{tpu_custom_call.1} parent=1 // loop_body
      %s20 = ssub.s32 %s15, 1
      %s21 = ssub.s32 %s15, 2
      %s22 = sadd.s32 %s15, 1
      %s23 = ssub.s32 %s15, %s22
      %p24 = scmp.eq.s32.totalorder %s23, 0
      %s26 = sadd.s32 %s25, 1
      %s27 = scalar_select %p24, %s25, %s26
      %p30 = pneg %p24
      %p31 = scmp.eq.s32.totalorder %s15, 1
      %p32 = por %p30, %p31
      %p33 = scmp.ne.s32.totalorder %s25, %s28
      %p34 = scmp.eq.s32.totalorder %s15, 0
      %p35 = por %p33, %p34
      %p36 = scmp.ne.s32.totalorder %s25, %s28
      %p37 = scmp.eq.s32.totalorder %s20, 1
      %p38 = por %p36, %p37
      %p39 = scmp.ne.s32.totalorder %s28, %s29
      %p40 = scmp.eq.s32.totalorder %s20, 0
      %p41 = por %p39, %p40
      %p42 = scmp.ne.s32.totalorder %s28, %s29
      %p43 = scmp.eq.s32.totalorder %s21, 1
      %p44 = por %p42, %p43
      %p46 = scmp.ne.s32.totalorder %s29, %s45
      %p47 = scmp.eq.s32.totalorder %s21, 0
      %p48 = por %p46, %p47
      %s50 = sadd.s32 %s49, 1
      %p53 = scmp.eq.s32.totalorder %s15, 1
      %p54 = scmp.ne.s32.totalorder %s49, %s51
      %p55 = scmp.eq.s32.totalorder %s15, 0
      %p56 = por %p54, %p55
      %p57 = scmp.ne.s32.totalorder %s49, %s51
      %p58 = scmp.eq.s32.totalorder %s20, 1
      %p59 = por %p57, %p58
      %p60 = scmp.ne.s32.totalorder %s51, %s52
      %p61 = scmp.eq.s32.totalorder %s20, 0
      %p62 = por %p60, %p61
      %p63 = scmp.ne.s32.totalorder %s51, %s52
      %p64 = scmp.eq.s32.totalorder %s21, 1
      %p65 = por %p63, %p64
      %p67 = scmp.ne.s32.totalorder %s52, %s66
      %p68 = scmp.eq.s32.totalorder %s21, 0
      %p69 = por %p67, %p68
      %s71 = sadd.s32 %s70, 1
      %p74 = scmp.eq.s32.totalorder %s15, 1
      %p75 = scmp.ne.s32.totalorder %s70, %s72
      %p76 = scmp.eq.s32.totalorder %s15, 0
      %p77 = por %p75, %p76
      %p78 = scmp.ne.s32.totalorder %s70, %s72
      %p79 = scmp.eq.s32.totalorder %s20, 1
      %p80 = por %p78, %p79
      %p81 = scmp.ne.s32.totalorder %s72, %s73
      %p82 = scmp.eq.s32.totalorder %s20, 0
      %p83 = por %p81, %p82
      %p84 = scmp.ne.s32.totalorder %s72, %s73
      %p85 = scmp.eq.s32.totalorder %s21, 1
      %p86 = por %p84, %p85
      %p88 = scmp.ne.s32.totalorder %s73, %s87
      %p89 = scmp.eq.s32.totalorder %s21, 0
      %p90 = por %p88, %p89
      %s91 = ssub.s32 %s15, %s22
      %p92 = scmp.eq.s32.totalorder %s91, 0
      %s94 = sadd.s32 %s93, 1
      %s95 = scalar_select %p92, %s93, %s94
      %p98 = pneg %p92
      %p99 = scmp.eq.s32.totalorder %s15, 1
      %p100 = por %p98, %p99
      %p101 = scmp.ne.s32.totalorder %s93, %s96
      %p102 = scmp.eq.s32.totalorder %s15, 0
      %p103 = por %p101, %p102
      %p104 = scmp.ne.s32.totalorder %s93, %s96
      %p105 = scmp.eq.s32.totalorder %s20, 1
      %p106 = por %p104, %p105
      %p107 = scmp.ne.s32.totalorder %s96, %s97
      %p108 = scmp.eq.s32.totalorder %s20, 0
      %p109 = por %p107, %p108
      %p110 = scmp.ne.s32.totalorder %s96, %s97
      %p111 = scmp.eq.s32.totalorder %s21, 1
      %p112 = por %p110, %p111
      %p114 = scmp.ne.s32.totalorder %s97, %s113
      %p115 = scmp.eq.s32.totalorder %s21, 0
      %p116 = por %p114, %p115
      %p117 = scmp.le.s32.totalorder 1, %s15
      %p118 = scmp.lt.s32.totalorder %s15, 3
      %p119 = pnand %p117, %p118
      %p120 = pneg %p119
      // Predicated region
      $region9: #{tpu_custom_call.1} parent=5 // pred_check
        _
      $region10: #{tpu_custom_call.1} parent=5 // pred_check_branch
        %122 = sbr.rel (%p119) target = $region12
      $region11: #{tpu_custom_call.1} parent=5 // pred_region
        %s123 = ssub.s32 %s15, 1
        // Predicated region
        $region13: #{tpu_custom_call.1} parent=11 // pred_check
          %p124 = pneg %p62
        $region14: #{tpu_custom_call.1} parent=11 // pred_check_branch
          %126 = sbr.rel (%p124) target = $region16
        $region15: #{tpu_custom_call.1} parent=11 // pred_region
          _
        $region16: #{tpu_custom_call.1} parent=11 // pred_fallthru
          _
        // Predicated region
        $region17: #{tpu_custom_call.1} parent=11 // pred_check
          %p127 = pneg %p83
        $region18: #{tpu_custom_call.1} parent=11 // pred_check_branch
          %129 = sbr.rel (%p127) target = $region20
        $region19: #{tpu_custom_call.1} parent=11 // pred_region
          _
        $region20: #{tpu_custom_call.1} parent=11 // pred_fallthru
          _
      $region12: #{tpu_custom_call.1} parent=5 // pred_fallthru
        _
      %p130 = scmp.lt.s32.totalorder %s15, 2
      // Predicated region
      $region21: #{tpu_custom_call.1} parent=5 // pred_check
        %p131 = pneg %p130
      $region22: #{tpu_custom_call.1} parent=5 // pred_check_branch
        %133 = sbr.rel (%p131) target = $region24
      $region23: #{tpu_custom_call.1} parent=5 // pred_region
        // Predicated region
        $region25: #{tpu_custom_call.1} parent=23 // pred_check
          %p134 = pneg %p35
        $region26: #{tpu_custom_call.1} parent=23 // pred_check_branch
          %136 = sbr.rel (%p134) target = $region28
        $region27: #{tpu_custom_call.1} parent=23 // pred_region
          %s137 = sand.u32 %s25, 1
          %s138 = scalar_lea.sflag [#allocation3], %s137
          %s139 = sand.u32 %s25, 1
          %s140 = smul.addr %s139, 64
          %s141 = scalar_lea.vmem [#allocation2], %s140
          %143 = vsyncadd %s138, 0
          %s144 = smul.addr %s15, 8
          %s145 = smul.addr %s144, 8
          %s146 = scalar_lea.hbm %s0, %s145
          %s147 = sshll.u32 %s146, 4
          %s148 = int_to_ptr.hbm [resolvable:$true] %s147
          %s149 = sshll.u32 %s141, 4
          %s150 = int_to_ptr.vmem [resolvable:$true] %s149
          %155 = dma.hbm_to_vmem [thread:$0]  %s148, 1024, %s150, %s138, 256, 256, 16
        $region28: #{tpu_custom_call.1} parent=23 // pred_fallthru
          _
      $region24: #{tpu_custom_call.1} parent=5 // pred_fallthru
        _
      %p156 = scmp.le.s32.totalorder 1, %s15
      %p157 = scmp.lt.s32.totalorder %s15, 3
      %p158 = pnand %p156, %p157
      %p159 = pneg %p158
      // Predicated region
      $region29: #{tpu_custom_call.1} parent=5 // pred_check
        _
      $region30: #{tpu_custom_call.1} parent=5 // pred_check_branch
        %161 = sbr.rel (%p158) target = $region32
      $region31: #{tpu_custom_call.1} parent=5 // pred_region
        %s162 = ssub.s32 %s15, 1
        %s163 = sand.u32 %s28, 1
        %s164 = scalar_lea.sflag [#allocation3], %s163
        %s165 = sand.u32 %s28, 1
        %s166 = smul.addr %s165, 64
        %s167 = scalar_lea.vmem [#allocation2], %s166
        // Predicated region
        $region33: #{tpu_custom_call.1} parent=31 // pred_check
          %p168 = pneg %p41
        $region34: #{tpu_custom_call.1} parent=31 // pred_check_branch
          %170 = sbr.rel (%p168) target = $region36
        $region35: #{tpu_custom_call.1} parent=31 // pred_region
          %172 = dma.done %s164, 1024
        $region36: #{tpu_custom_call.1} parent=31 // pred_fallthru
          _
        %s173 = sand.u32 %s28, 1
        %s174 = scalar_lea.sflag [#allocation3], %s173
        %s175 = sand.u32 %s28, 1
        %s176 = smul.addr %s175, 64
        %s177 = scalar_lea.vmem [#allocation2], %s176
        %p178 = pneg %p41
        %p179 = pneg %p38
        %p180 = pneg %p62
        %p181 = pneg %p59
        %p182 = pneg %p83
        %p183 = pneg %p80
        %p184 = pneg %p109
        %p185 = pneg %p106
        %s186 = sand.u32 %s96, 1
        %s187 = scalar_lea.sflag [#allocation4], %s186
        %s188 = sand.u32 %s96, 1
        %s189 = smul.addr %s188, 64
        %s190 = scalar_lea.vmem [#allocation5], %s189
        %v191 = vld [vmem:[%s167] sm:$0xff]
        %v192 = vld [vmem:[%s167 + $0x8] sm:$0xff]
        %v193 = vld [vmem:[%s167 + $0x10] sm:$0xff]
        %v194 = vld [vmem:[%s167 + $0x18] sm:$0xff]
        %v195 = vld [vmem:[%s167 + $0x20] sm:$0xff]
        %v196 = vld [vmem:[%s167 + $0x28] sm:$0xff]
        %v197 = vld [vmem:[%s167 + $0x30] sm:$0xff]
        %v198 = vld [vmem:[%s167 + $0x38] sm:$0xff]
        %v199 = vmax.f32 %v191, %v192
        %200 = vmax.xlane.f32.xlu0 %v199
        %v201 = vpop.xlane.xlu0 %200
        %v202 = vmax.f32 %v193, %v194
        %203 = vmax.xlane.f32.xlu0 %v202
        %v204 = vpop.xlane.xlu0 %203
        %v205 = vmax.f32 %v195, %v196
        %206 = vmax.xlane.f32.xlu0 %v205
        %v207 = vpop.xlane.xlu0 %206
        %v208 = vmax.f32 %v197, %v198
        %209 = vmax.xlane.f32.xlu0 %v208
        %v210 = vpop.xlane.xlu0 %209
        %v211 = vld [vmem:[%s1] sm:$0xff]
        %v212 = vld [vmem:[%s1 + $0x8] sm:$0xff]
        %v213 = vld [vmem:[%s1 + $0x10] sm:$0xff]
        %v214 = vld [vmem:[%s1 + $0x18] sm:$0xff]
        %v215 = vld [vmem:[%s2] sm:$0xff]
        %v216 = vld [vmem:[%s2 + $0x8] sm:$0xff]
        %v217 = vld [vmem:[%s2 + $0x10] sm:$0xff]
        %v218 = vld [vmem:[%s2 + $0x18] sm:$0xff]
        %v219 = vmul.f32 %v211, %v201
        %v220 = vmul.f32 %v212, %v204
        %v221 = vmul.f32 %v213, %v207
        %v222 = vmul.f32 %v214, %v210
        %vm223 = vcmask 15360
        %v224 = vsel %vm223, %v219, 0.0
        %v225 = vsel %vm223, %v220, 0.0
        %v226 = vadd.f32 %v224, %v225
        %v227 = vsel %vm223, %v221, 0.0
        %v228 = vadd.f32 %v226, %v227
        %v229 = vsel %vm223, %v222, 0.0
        %v230 = vadd.f32 %v228, %v229
        %v231 = vrot.slane %v230, 4
        %v232 = vadd.f32 %v230, %v231
        %v233 = vrot.slane %v232, 2
        %v234 = vadd.f32 %v232, %v233
        %v235 = vrot.slane %v234, 1
        %v236 = vadd.f32 %v234, %v235
        %v237 = vmax.f32 %v236, 0.0
        %v238 = vmul.f32 %v215, %v237
        %v239 = vmul.f32 %v216, %v237
        %v240 = vmul.f32 %v217, %v237
        %v241 = vmul.f32 %v218, %v237
        %v242 = vsel %vm223, %v238, 0.0
        %243 = vadd.xlane.f32.xlu0 %v242
        %v244 = vpop.xlane.xlu0 %243
        %v245 = vsel %vm223, %v239, 0.0
        %246 = vadd.xlane.f32.xlu0 %v245
        %v247 = vpop.xlane.xlu0 %246
        %v248 = vsel %vm223, %v240, 0.0
        %249 = vadd.xlane.f32.xlu0 %v248
        %v250 = vpop.xlane.xlu0 %249
        %v251 = vsel %vm223, %v241, 0.0
        %252 = vadd.xlane.f32.xlu0 %v251
        %v253 = vpop.xlane.xlu0 %252
        %v254 = vxor.u32 %v244, 2147483648
        %v255 = vxor.u32 %v247, 2147483648
        %v256 = vxor.u32 %v250, 2147483648
        %v257 = vxor.u32 %v253, 2147483648
        %v258 = vmul.f32 %v254, 1.442695
        %v259 = vpow.pop %v258
        %v260 = vmul.f32 %v255, 1.442695
        %v261 = vpow.pop %v260
        %v262 = vmul.f32 %v256, 1.442695
        %v263 = vpow.pop %v262
        %v264 = vmul.f32 %v257, 1.442695
        %v265 = vpow.pop %v264
        %v266 = vadd.f32 %v259, 1.0
        %v267 = vadd.f32 %v261, 1.0
        %v268 = vadd.f32 %v263, 1.0
        %v269 = vadd.f32 %v265, 1.0
        %v270 = vrcp.pop %v266
        %v271 = vmul.f32 %v266, %v270
        %v272 = vsub.f32 1.0, %v271
        %v273 = vmul.f32 %v270, %v272
        %v274 = vadd.f32 %v270, %v273
        %vm275 = vweird.f32 %v266
        %vm276 = vweird.f32 %v270
        %vm277 = vmor %vm275, %vm276
        %v278 = vsel %vm277, %v270, %v274
        %v279 = vand.u32 2147483647, %v266
        %vm280 = vcmp.eq.f32.partialorder %v279, 8.507059e+37
        %v281 = vand.u32 %v266, 2147483648
        %v282 = vor.u32 1.1754944e-38, %v281
        %v283 = vsel %vm280, %v282, %v278
        %v284 = vmul.f32 1.0, %v283
        %v285 = vrcp.pop %v267
        %v286 = vmul.f32 %v267, %v285
        %v287 = vsub.f32 1.0, %v286
        %v288 = vmul.f32 %v285, %v287
        %v289 = vadd.f32 %v285, %v288
        %vm290 = vweird.f32 %v267
        %vm291 = vweird.f32 %v285
        %vm292 = vmor %vm290, %vm291
        %v293 = vsel %vm292, %v285, %v289
        %v294 = vand.u32 2147483647, %v267
        %vm295 = vcmp.eq.f32.partialorder %v294, 8.507059e+37
        %v296 = vand.u32 %v267, 2147483648
        %v297 = vor.u32 1.1754944e-38, %v296
        %v298 = vsel %vm295, %v297, %v293
        %v299 = vmul.f32 1.0, %v298
        %v300 = vrcp.pop %v268
        %v301 = vmul.f32 %v268, %v300
        %v302 = vsub.f32 1.0, %v301
        %v303 = vmul.f32 %v300, %v302
        %v304 = vadd.f32 %v300, %v303
        %vm305 = vweird.f32 %v268
        %vm306 = vweird.f32 %v300
        %vm307 = vmor %vm305, %vm306
        %v308 = vsel %vm307, %v300, %v304
        %v309 = vand.u32 2147483647, %v268
        %vm310 = vcmp.eq.f32.partialorder %v309, 8.507059e+37
        %v311 = vand.u32 %v268, 2147483648
        %v312 = vor.u32 1.1754944e-38, %v311
        %v313 = vsel %vm310, %v312, %v308
        %v314 = vmul.f32 1.0, %v313
        %v315 = vrcp.pop %v269
        %v316 = vmul.f32 %v269, %v315
        %v317 = vsub.f32 1.0, %v316
        %v318 = vmul.f32 %v315, %v317
        %v319 = vadd.f32 %v315, %v318
        %vm320 = vweird.f32 %v269
        %vm321 = vweird.f32 %v315
        %vm322 = vmor %vm320, %vm321
        %v323 = vsel %vm322, %v315, %v319
        %v324 = vand.u32 2147483647, %v269
        %vm325 = vcmp.eq.f32.partialorder %v324, 8.507059e+37
        %v326 = vand.u32 %v269, 2147483648
        %v327 = vor.u32 1.1754944e-38, %v326
        %v328 = vsel %vm325, %v327, %v323
        %v329 = vmul.f32 1.0, %v328
        %v330 = vmul.f32 %v284, %v191
        %v331 = vmul.f32 %v284, %v192
        %v332 = vmul.f32 %v299, %v193
        %v333 = vmul.f32 %v299, %v194
        %v334 = vmul.f32 %v314, %v195
        %v335 = vmul.f32 %v314, %v196
        %v336 = vmul.f32 %v329, %v197
        %v337 = vmul.f32 %v329, %v198
        %338 = vst [vmem:[%s190] sm:$0xff] %v330
        %339 = vst [vmem:[%s190 + $0x8] sm:$0xff] %v331
        %340 = vst [vmem:[%s190 + $0x10] sm:$0xff] %v332
        %341 = vst [vmem:[%s190 + $0x18] sm:$0xff] %v333
        %342 = vst [vmem:[%s190 + $0x20] sm:$0xff] %v334
        %343 = vst [vmem:[%s190 + $0x28] sm:$0xff] %v335
        %344 = vst [vmem:[%s190 + $0x30] sm:$0xff] %v336
        %345 = vst [vmem:[%s190 + $0x38] sm:$0xff] %v337
        %s346 = sand.u32 %s96, 1
        %s347 = scalar_lea.sflag [#allocation4], %s346
        %s348 = sand.u32 %s96, 1
        %s349 = smul.addr %s348, 64
        %s350 = scalar_lea.vmem [#allocation5], %s349
        // Predicated region
        $region37: #{tpu_custom_call.1} parent=31 // pred_check
          %p351 = pneg %p106
        $region38: #{tpu_custom_call.1} parent=31 // pred_check_branch
          %353 = sbr.rel (%p351) target = $region40
        $region39: #{tpu_custom_call.1} parent=31 // pred_region
          %355 = vsyncadd %s347, 0
          %s356 = smul.addr %s20, 8
          %s357 = smul.addr %s356, 8
          %s358 = scalar_lea.hbm %s3, %s357
          %s359 = sshll.u32 %s350, 4
          %s360 = int_to_ptr.vmem [resolvable:$true] %s359
          %s361 = sshll.u32 %s358, 4
          %s362 = int_to_ptr.hbm [resolvable:$true] %s361
          %367 = dma.vmem_to_hbm [thread:$0]  %s360, 1024, %s362, %s347, 256, 256, 16
        $region40: #{tpu_custom_call.1} parent=31 // pred_fallthru
          _
      $region32: #{tpu_custom_call.1} parent=5 // pred_fallthru
        _
      %p368 = scmp.le.s32.totalorder 2, %s15
      // Predicated region
      $region41: #{tpu_custom_call.1} parent=5 // pred_check
        %p369 = pneg %p368
      $region42: #{tpu_custom_call.1} parent=5 // pred_check_branch
        %371 = sbr.rel (%p369) target = $region44
      $region43: #{tpu_custom_call.1} parent=5 // pred_region
        %s372 = ssub.s32 %s15, 2
        // Predicated region
        $region45: #{tpu_custom_call.1} parent=43 // pred_check
          %p373 = pneg %p112
        $region46: #{tpu_custom_call.1} parent=43 // pred_check_branch
          %375 = sbr.rel (%p373) target = $region48
        $region47: #{tpu_custom_call.1} parent=43 // pred_region
          %s376 = sand.u32 %s97, 1
          %s377 = scalar_lea.sflag [#allocation4], %s376
          %s378 = sand.u32 %s97, 1
          %s379 = smul.addr %s378, 64
          %s380 = scalar_lea.vmem [#allocation5], %s379
          %382 = dma.done %s377, 1024
        $region48: #{tpu_custom_call.1} parent=43 // pred_fallthru
          _
      $region44: #{tpu_custom_call.1} parent=5 // pred_fallthru
        _
    $region6: #{tpu_custom_call.1} parent=1 // loop_footer
      %s19 = sadd.s32 1, %s15
    $region7: #{tpu_custom_call.1} parent=1 // loop_footer_branch
      %14 = sbr.rel target = $region3
    $region8: #{tpu_custom_call.1} parent=1 // loop_exit
      _
    %383 = vsyncpa [#allocation3], 1
    %s384 = scalar_lea.sflag [#allocation3], 1
    %385 = vsyncpa %s384, 1
    %386 = vsyncpa [#allocation4], 1
    %s387 = scalar_lea.sflag [#allocation4], 1
    %388 = vsyncpa %s387, 1

</llo_original>
